<compile_context>
chip_gen: v7x
topology: tpu7x:2x2x1
jax: 0.10.0
libtpu: 0.0.40
codegen_flags: <defaults>
</compile_context>

<pallas_src>
import jax
import jax.numpy as jnp
from jax.experimental import pallas as pl
from jax.experimental.pallas import tpu as pltpu


# ----------------------------- kernel body ---------------------------------

def _mod_kernel(scale_ref, shift_ref, x_ref, o_ref):
    # scale/shift blocks are either (t_r, 1) (lane-broadcast path) or
    # (t_r, t_l) (pre-expanded small-HW path); jnp broadcasting covers both.
    x = x_ref[...]
    s = scale_ref[...].astype(x.dtype)
    t = shift_ref[...].astype(x.dtype)
    o_ref[...] = x * s + t


# ----------------------------- tiling helper --------------------------------

_ROW_TILE_CAP = 256        # sublane-axis tile cap
_LANE_TILE_CAP = 4096      # lane-axis tile cap: 256 x 4096 x f32 = 4 MiB block


def _tile(dim, cap, multiple):
    """Tile size for one axis: full extent if it fits under the cap (a
    full-extent block is always layout-legal), otherwise the largest multiple
    of `multiple` <= cap.  Ragged last blocks are handled by a cdiv grid."""
    if dim <= cap:
        return dim
    return (cap // multiple) * multiple


# ------------------------------- wrapper ------------------------------------

@jax.jit
def affine_transform_pallas(x_nchw, latent, weight, bias):
    """x_nchw: (B, C, H, W); latent: (B, L); weight: (2C, L); bias: (2C,)."""
    B, C, H, W = x_nchw.shape
    HW = H * W
    dtype = x_nchw.dtype

    # Tiny style Linear hoisted into plain XLA.
    style = (latent.astype(jnp.float32) @ weight.astype(jnp.float32).T
             + bias.astype(jnp.float32))                     # (B, 2C)
    scale = style[:, :C] + 1.0                               # (B, C)
    shift = style[:, C:]                                     # (B, C)

    if HW >= 128:
        # Lane-dense view with HW on the lane axis; flatten B*C into rows.
        rows, lane_dim = B * C, HW
        x2 = x_nchw.reshape(rows, lane_dim)                  # free reshape
        sc2 = scale.reshape(rows, 1)
        sh2 = shift.reshape(rows, 1)
        broadcast_ss = True
    else:
        # Small spatial maps (e.g. 4x4 / 8x8): use (B, C*HW) so the lane axis
        # is a large multiple of 128; expand scale/shift per element in XLA.
        rows, lane_dim = B, C * HW
        x2 = x_nchw.reshape(rows, lane_dim)
        sc2 = jnp.broadcast_to(scale.astype(dtype)[:, :, None],
                               (B, C, HW)).reshape(rows, lane_dim)
        sh2 = jnp.broadcast_to(shift.astype(dtype)[:, :, None],
                               (B, C, HW)).reshape(rows, lane_dim)
        broadcast_ss = False

    # dtype-aware sublane multiple (f32: 8, bf16: 16, int8/fp8: 32).
    sub = max(8, 32 // max(1, x_nchw.dtype.itemsize))
    t_r = _tile(rows, _ROW_TILE_CAP, sub)
    t_l = _tile(lane_dim, _LANE_TILE_CAP, 128)
    grid = (pl.cdiv(rows, t_r), pl.cdiv(lane_dim, t_l))

    x_spec = pl.BlockSpec((t_r, t_l), lambda r, l: (r, l))
    if broadcast_ss:
        # Block index independent of the lane axis -> scale/shift DMAs only
        # fire when the row tile changes (innermost grid axis is the lane one).
        ss_spec = pl.BlockSpec((t_r, 1), lambda r, l: (r, 0))
    else:
        ss_spec = x_spec

    out2 = pl.pallas_call(
        _mod_kernel,
        out_shape=jax.ShapeDtypeStruct((rows, lane_dim), dtype),
        grid_spec=pltpu.PrefetchScalarGridSpec(
            num_scalar_prefetch=0,
            grid=grid,
            in_specs=[ss_spec, ss_spec, x_spec],
            out_specs=x_spec,
        ),
        compiler_params=pltpu.CompilerParams(
            dimension_semantics=("parallel", "parallel"),
            vmem_limit_bytes=48 * 1024 * 1024),
    )(sc2, sh2, x2)

    return out2.reshape(B, C, H, W)


# ------------------------------ module wrapper -------------------------------

class StyleModPallas:
    """Mirrors Style_Mod: a dict of AffineTransform params keyed by channel."""

    def __init__(self, in_channel_list=(32, 64, 128, 256, 512), latent_dim=512,
                 seed=0):
        self.latent_dim = latent_dim
        self.params = {}
        key = jax.random.PRNGKey(seed)
        bound = 1.0 / float(latent_dim) ** 0.5
        for c in in_channel_list:
            key, kw, kb = jax.random.split(key, 3)
            # Deterministic synthetic init (nn.Linear shapes: (2C, L), (2C,)).
            w = jax.random.uniform(kw, (2 * c, latent_dim), jnp.float32,
                                   -bound, bound)
            b = jax.random.uniform(kb, (2 * c,), jnp.float32, -bound, bound)
            self.params[c] = (w, b)

    def __call__(self, x, latent):
        c = x.shape[1]
        w, b = self.params[c]
        return affine_transform_pallas(x, latent, w, b)


def _reference(x, latent, weight, bias):
    C = x.shape[1]
    style = latent @ weight.T + bias          # (B, 2C)
    scale = style[:, :C] + 1.0
    shift = style[:, C:]
    return x * scale[:, :, None, None] + shift[:, :, None, None]


if __name__ == "__main__":
    key = jax.random.PRNGKey(0)
    kx1, kx2, kl = jax.random.split(key, 3)

    latent_dim = 512
    mod = StyleModPallas(in_channel_list=(32, 64), latent_dim=latent_dim, seed=0)
    latent = jax.random.normal(kl, (2, latent_dim), jnp.float32)

    # Case 1: HW >= 128 -> (B*C, HW) lane-dense rows view.
    x1 = jax.random.normal(kx1, (2, 32, 16, 16), jnp.float32)
    out1 = jax.block_until_ready(mod(x1, latent))
    w, b = mod.params[32]
    ref1 = _reference(x1, latent, w, b)
    assert out1.shape == x1.shape
    assert jnp.max(jnp.abs(out1 - ref1)) < 1e-4, "mismatch (HW>=128 path)"

    # Case 2: HW < 128 -> lane-dense (B, C*HW) view with expanded scale/shift.
    x2 = jax.random.normal(kx2, (2, 64, 8, 8), jnp.float32)
    out2 = jax.block_until_ready(mod(x2, latent))
    w, b = mod.params[64]
    ref2 = _reference(x2, latent, w, b)
    assert out2.shape == x2.shape
    assert jnp.max(jnp.abs(out2 - ref2)) < 1e-4, "mismatch (HW<128 path)"

    print("KERNEL_OK")
</pallas_src>

<mosaic_0001>
module attributes {stable_mosaic.version = 11 : i64} {
  func.func @_mod_kernel(%arg0: i32, %arg1: i32, %arg2: memref<64x1xf32, #tpu.memory_space<vmem>>, %arg3: memref<64x1xf32, #tpu.memory_space<vmem>>, %arg4: memref<64x256xf32, #tpu.memory_space<vmem>>, %arg5: memref<64x256xf32, #tpu.memory_space<vmem>>) attributes {dimension_semantics = [#tpu.dimension_semantics<parallel>, #tpu.dimension_semantics<parallel>], iteration_bounds = array<i64: 1, 1>, scalar_prefetch = 0 : i64, scratch_operands = 0 : i64, tpu.core_type = #tpu.core_type<tc>, window_params = [{transform_indices = @transform_0, window_bounds = array<i64: 64, 1>}, {transform_indices = @transform_1, window_bounds = array<i64: 64, 1>}, {transform_indices = @transform_2, window_bounds = array<i64: 64, 256>}, {transform_indices = @transform_3, window_bounds = array<i64: 64, 256>}]} {
    %c0 = arith.constant 0 : index
    %c0_0 = arith.constant 0 : index
    %0 = vector.load %arg4[%c0, %c0_0] : memref<64x256xf32, #tpu.memory_space<vmem>>, vector<64x256xf32>
    %c0_1 = arith.constant 0 : index
    %c0_2 = arith.constant 0 : index
    %1 = vector.load %arg2[%c0_1, %c0_2] : memref<64x1xf32, #tpu.memory_space<vmem>>, vector<64x1xf32>
    %c0_3 = arith.constant 0 : index
    %c0_4 = arith.constant 0 : index
    %2 = vector.load %arg3[%c0_3, %c0_4] : memref<64x1xf32, #tpu.memory_space<vmem>>, vector<64x1xf32>
    %3 = vector.broadcast %1 : vector<64x1xf32> to vector<64x256xf32>
    %4 = arith.mulf %0, %3 : vector<64x256xf32>
    %5 = vector.broadcast %2 : vector<64x1xf32> to vector<64x256xf32>
    %6 = arith.addf %4, %5 : vector<64x256xf32>
    %c0_5 = arith.constant 0 : index
    %c0_6 = arith.constant 0 : index
    %7 = vector.load %arg5[%c0_5, %c0_6] : memref<64x256xf32, #tpu.memory_space<vmem>>, vector<64x256xf32>
    tpu.vector_store %arg5[%c0_5, %c0_6], %6 {strides = array<i32>} : memref<64x256xf32, #tpu.memory_space<vmem>>, vector<64x256xf32>,
    return
  }
  func.func @transform_0(%arg0: i32, %arg1: i32) -> (i32, i32) {
    %c0_i32 = arith.constant 0 : i32
    %c0_i32_0 = arith.constant 0 : i32
    return %arg0, %c0_i32 : i32, i32
  }
  func.func @transform_1(%arg0: i32, %arg1: i32) -> (i32, i32) {
    %c0_i32 = arith.constant 0 : i32
    %c0_i32_0 = arith.constant 0 : i32
    return %arg0, %c0_i32 : i32, i32
  }
  func.func @transform_2(%arg0: i32, %arg1: i32) -> (i32, i32) {
    %c0_i32 = arith.constant 0 : i32
    return %arg0, %arg1 : i32, i32
  }
  func.func @transform_3(%arg0: i32, %arg1: i32) -> (i32, i32) {
    %c0_i32 = arith.constant 0 : i32
    return %arg0, %arg1 : i32, i32
  }
}

</mosaic_0001>

<llo_original>
// kernel: affine_transform_pallas.1
$region0: #{affine_transform_pallas.1}
  #allocation0 [shape = 'u32[]', space=smem, size = 0x4, offset = 0x4, fixed_abs, tag = 'smem constant byte address 0x4 - core index']
  #allocation1 [shape = 'u32[144,128]{1,0:T(1,128)}', space=vmem, size = 0x12000, scoped, tag = 'internal scratch']
  %s0 = inlined_call_operand.vmem [shape: f32[64,1], index: 0, kind: input, shape index: {}]
  %s1 = inlined_call_operand.vmem [shape: f32[64,1], index: 1, kind: input, shape index: {}]
  %s2 = inlined_call_operand.vmem [shape: f32[64,256], index: 2, kind: input, shape index: {}]
  %s3 = inlined_call_operand.vmem [shape: f32[64,256], index: 3, kind: output, shape index: {}]
  %s4 = sld [smem:[#allocation0]]
  $region22: #{affine_transform_pallas.1} parent=0
    _
  %s6 = ssub.s32 1, %s4
  %s7 = scalar_select 0, %s6, %s4
  // Predicated region
  $region2: #{affine_transform_pallas.1} parent=0 // pred_check
    _
  $region3: #{affine_transform_pallas.1} parent=0 // pred_check_branch
    %9 = sbr.rel (0) target = $region5
  $region4: #{affine_transform_pallas.1} parent=0 // pred_region
    _
  $region5: #{affine_transform_pallas.1} parent=0 // pred_fallthru
    _
  // Predicated region
  $region6: #{affine_transform_pallas.1} parent=0 // pred_check
    _
  $region7: #{affine_transform_pallas.1} parent=0 // pred_check_branch
    %11 = sbr.rel (0) target = $region9
  $region8: #{affine_transform_pallas.1} parent=0 // pred_region
    _
  $region9: #{affine_transform_pallas.1} parent=0 // pred_fallthru
    _
  // Predicated region
  $region10: #{affine_transform_pallas.1} parent=0 // pred_check
    _
  $region11: #{affine_transform_pallas.1} parent=0 // pred_check_branch
    %13 = sbr.rel (0) target = $region13
  $region12: #{affine_transform_pallas.1} parent=0 // pred_region
    _
  $region13: #{affine_transform_pallas.1} parent=0 // pred_fallthru
    _
  %v14 = vld [vmem:[%s2] sm:$0xff]
  %v15 = vld [vmem:[%s2 + $0x8] sm:$0xff]
  %v16 = vld [vmem:[%s2 + $0x10] sm:$0xff]
  %v17 = vld [vmem:[%s2 + $0x18] sm:$0xff]
  %v18 = vld [vmem:[%s2 + $0x20] sm:$0xff]
  %v19 = vld [vmem:[%s2 + $0x28] sm:$0xff]
  %v20 = vld [vmem:[%s2 + $0x30] sm:$0xff]
  %v21 = vld [vmem:[%s2 + $0x38] sm:$0xff]
  %v22 = vld [vmem:[%s2 + $0x40] sm:$0xff]
  %v23 = vld [vmem:[%s2 + $0x48] sm:$0xff]
  %v24 = vld [vmem:[%s2 + $0x50] sm:$0xff]
  %v25 = vld [vmem:[%s2 + $0x58] sm:$0xff]
  %v26 = vld [vmem:[%s2 + $0x60] sm:$0xff]
  %v27 = vld [vmem:[%s2 + $0x68] sm:$0xff]
  %v28 = vld [vmem:[%s2 + $0x70] sm:$0xff]
  %v29 = vld [vmem:[%s2 + $0x78] sm:$0xff]
  %v30 = vld [vmem:[%s0] sm:$0xff]
  %v31 = vld [vmem:[%s0 + $0x8] sm:$0xff]
  %v32 = vld [vmem:[%s0 + $0x10] sm:$0xff]
  %v33 = vld [vmem:[%s0 + $0x18] sm:$0xff]
  %v34 = vld [vmem:[%s0 + $0x20] sm:$0xff]
  %v35 = vld [vmem:[%s0 + $0x28] sm:$0xff]
  %v36 = vld [vmem:[%s0 + $0x30] sm:$0xff]
  %v37 = vld [vmem:[%s0 + $0x38] sm:$0xff]
  %v38 = vld [vmem:[%s1] sm:$0xff]
  %v39 = vld [vmem:[%s1 + $0x8] sm:$0xff]
  %v40 = vld [vmem:[%s1 + $0x10] sm:$0xff]
  %v41 = vld [vmem:[%s1 + $0x18] sm:$0xff]
  %v42 = vld [vmem:[%s1 + $0x20] sm:$0xff]
  %v43 = vld [vmem:[%s1 + $0x28] sm:$0xff]
  %v44 = vld [vmem:[%s1 + $0x30] sm:$0xff]
  %v45 = vld [vmem:[%s1 + $0x38] sm:$0xff]
  %47 = vset.pattern.permute.xlu0 0
  %48 = vperm.xlu0 %47, %v30
  %v49 = vpop.permute.xlu0 %48
  %52 = vset.pattern.permute.xlu0 0
  %53 = vperm.xlu0 %52, %v31
  %v54 = vpop.permute.xlu0 %53
  %57 = vset.pattern.permute.xlu0 0
  %58 = vperm.xlu0 %57, %v32
  %v59 = vpop.permute.xlu0 %58
  %62 = vset.pattern.permute.xlu0 0
  %63 = vperm.xlu0 %62, %v33
  %v64 = vpop.permute.xlu0 %63
  %67 = vset.pattern.permute.xlu0 0
  %68 = vperm.xlu0 %67, %v34
  %v69 = vpop.permute.xlu0 %68
  %72 = vset.pattern.permute.xlu0 0
  %73 = vperm.xlu0 %72, %v35
  %v74 = vpop.permute.xlu0 %73
  %77 = vset.pattern.permute.xlu0 0
  %78 = vperm.xlu0 %77, %v36
  %v79 = vpop.permute.xlu0 %78
  %82 = vset.pattern.permute.xlu0 0
  %83 = vperm.xlu0 %82, %v37
  %v84 = vpop.permute.xlu0 %83
  %v86 = vmul.f32 %v14, %v49
  %v87 = vmul.f32 %v15, %v49
  %v88 = vmul.f32 %v16, %v54
  %v89 = vmul.f32 %v17, %v54
  %v90 = vmul.f32 %v18, %v59
  %v91 = vmul.f32 %v19, %v59
  %v92 = vmul.f32 %v20, %v64
  %v93 = vmul.f32 %v21, %v64
  %v94 = vmul.f32 %v22, %v69
  %v95 = vmul.f32 %v23, %v69
  %v96 = vmul.f32 %v24, %v74
  %v97 = vmul.f32 %v25, %v74
  %v98 = vmul.f32 %v26, %v79
  %v99 = vmul.f32 %v27, %v79
  %v100 = vmul.f32 %v28, %v84
  %v101 = vmul.f32 %v29, %v84
  %103 = vset.pattern.permute.xlu0 0
  %104 = vperm.xlu0 %103, %v38
  %v105 = vpop.permute.xlu0 %104
  %108 = vset.pattern.permute.xlu0 0
  %109 = vperm.xlu0 %108, %v39
  %v110 = vpop.permute.xlu0 %109
  %113 = vset.pattern.permute.xlu0 0
  %114 = vperm.xlu0 %113, %v40
  %v115 = vpop.permute.xlu0 %114
  %118 = vset.pattern.permute.xlu0 0
  %119 = vperm.xlu0 %118, %v41
  %v120 = vpop.permute.xlu0 %119
  %123 = vset.pattern.permute.xlu0 0
  %124 = vperm.xlu0 %123, %v42
  %v125 = vpop.permute.xlu0 %124
  %128 = vset.pattern.permute.xlu0 0
  %129 = vperm.xlu0 %128, %v43
  %v130 = vpop.permute.xlu0 %129
  %133 = vset.pattern.permute.xlu0 0
  %134 = vperm.xlu0 %133, %v44
  %v135 = vpop.permute.xlu0 %134
  %138 = vset.pattern.permute.xlu0 0
  %139 = vperm.xlu0 %138, %v45
  %v140 = vpop.permute.xlu0 %139
  %v142 = vadd.f32 %v86, %v105
  %v143 = vadd.f32 %v87, %v105
  %v144 = vadd.f32 %v88, %v110
  %v145 = vadd.f32 %v89, %v110
  %v146 = vadd.f32 %v90, %v115
  %v147 = vadd.f32 %v91, %v115
  %v148 = vadd.f32 %v92, %v120
  %v149 = vadd.f32 %v93, %v120
  %v150 = vadd.f32 %v94, %v125
  %v151 = vadd.f32 %v95, %v125
  %v152 = vadd.f32 %v96, %v130
  %v153 = vadd.f32 %v97, %v130
  %v154 = vadd.f32 %v98, %v135
  %v155 = vadd.f32 %v99, %v135
  %v156 = vadd.f32 %v100, %v140
  %v157 = vadd.f32 %v101, %v140
  %158 = vst [vmem:[%s3] sm:$0xff] %v142
  %159 = vst [vmem:[%s3 + $0x8] sm:$0xff] %v143
  %160 = vst [vmem:[%s3 + $0x10] sm:$0xff] %v144
  %161 = vst [vmem:[%s3 + $0x18] sm:$0xff] %v145
  %162 = vst [vmem:[%s3 + $0x20] sm:$0xff] %v146
  %163 = vst [vmem:[%s3 + $0x28] sm:$0xff] %v147
  %164 = vst [vmem:[%s3 + $0x30] sm:$0xff] %v148
  %165 = vst [vmem:[%s3 + $0x38] sm:$0xff] %v149
  %166 = vst [vmem:[%s3 + $0x40] sm:$0xff] %v150
  %167 = vst [vmem:[%s3 + $0x48] sm:$0xff] %v151
  %168 = vst [vmem:[%s3 + $0x50] sm:$0xff] %v152
  %169 = vst [vmem:[%s3 + $0x58] sm:$0xff] %v153
  %170 = vst [vmem:[%s3 + $0x60] sm:$0xff] %v154
  %171 = vst [vmem:[%s3 + $0x68] sm:$0xff] %v155
  %172 = vst [vmem:[%s3 + $0x70] sm:$0xff] %v156
  %173 = vst [vmem:[%s3 + $0x78] sm:$0xff] %v157
  // Predicated region
  $region14: #{affine_transform_pallas.1} parent=0 // pred_check
    _
  $region15: #{affine_transform_pallas.1} parent=0 // pred_check_branch
    %175 = sbr.rel (0) target = $region17
  $region16: #{affine_transform_pallas.1} parent=0 // pred_region
    _
  $region17: #{affine_transform_pallas.1} parent=0 // pred_fallthru
    _
  // Predicated region
  $region18: #{affine_transform_pallas.1} parent=0 // pred_check
    _
  $region19: #{affine_transform_pallas.1} parent=0 // pred_check_branch
    %177 = sbr.rel (0) target = $region21
  $region20: #{affine_transform_pallas.1} parent=0 // pred_region
    _
  $region21: #{affine_transform_pallas.1} parent=0 // pred_fallthru
    _

</llo_original>
